<compile_context>
chip_gen: v7x
topology: tpu7x:2x2x1
jax: 0.10.0
libtpu: 0.0.40
codegen_flags: <defaults>
</compile_context>

<pallas_src>
import math
import functools

import jax
import jax.numpy as jnp
from jax import lax
from jax.experimental import pallas as pl
from jax.experimental.pallas import tpu as pltpu


_ROW_TILE = 512                      # rows per grid step for large inputs (multiple of 8)
_VMEM_LIMIT_BYTES = 32 * 1024 * 1024 # explicit scoped-VMEM budget, safe on v5e/v6e/v7x


def make_pe_table(d_model: int, max_len: int) -> jnp.ndarray:
    """(max_len, 1, d_model) sinusoidal table, exactly like the PyTorch __init__."""
    position = jnp.arange(max_len, dtype=jnp.float32)[:, None]
    div_term = jnp.exp(jnp.arange(0, d_model, 2, dtype=jnp.float32)
                       * (-math.log(10000.0) / d_model))
    ang = position * div_term
    pe = jnp.zeros((max_len, d_model), dtype=jnp.float32)
    pe = pe.at[:, 0::2].set(jnp.sin(ang))
    pe = pe.at[:, 1::2].set(jnp.cos(ang))
    return pe[:, None, :]


def _tpu_compiler_params(dims, vmem_bytes):
    """Build Mosaic compiler params; degrade gracefully if the API name drifts."""
    cls = getattr(pltpu, "CompilerParams", None)
    if cls is None:
        return None
    try:
        return cls(dimension_semantics=dims, vmem_limit_bytes=vmem_bytes)
    except TypeError:
        return None


def _row_tile(total_rows: int) -> int:
    # Whole array if small (block == full dim is always legal), else 512 rows
    # (multiple of 8 sublanes, ~HBM-roofline-saturating tile).
    return total_rows if total_rows <= 1024 else _ROW_TILE


# ---------------------------------------------------------------------------
# Kernel 1: fused  scale * x + pe  + dropout   over lane-dense (rows, D) tiles
# ---------------------------------------------------------------------------
def _pe_dropout_kernel(seed_ref, x_ref, pe_ref, o_ref, *, p: float, training: bool,
                       scale: float):
    y = x_ref[...].astype(jnp.float32)
    if scale != 1.0:
        y = y * jnp.float32(scale)
    y = y + pe_ref[...].astype(jnp.float32)

    if training and p >= 1.0:
        y = jnp.zeros_like(y)
    elif training and p > 0.0:
        rows, cols = y.shape
        row0 = pl.program_id(0) * rows                      # global row offset of this tile
        r = lax.broadcasted_iota(jnp.int32, (rows, cols), 0)
        c = lax.broadcasted_iota(jnp.int32, (rows, cols), 1)
        lin = (row0 + r) * cols + c                         # unique global element index
        h = lin.astype(jnp.uint32) + seed_ref[0].astype(jnp.uint32) * jnp.uint32(0x9E3779B9)
        # lowbias32 integer mixer -> well-distributed 32-bit values per element.
        h = h ^ (h >> 16)
        h = h * jnp.uint32(0x7FEB352D)
        h = h ^ (h >> 15)
        h = h * jnp.uint32(0x846CA68B)
        h = h ^ (h >> 16)
        threshold = jnp.uint32(min(int(round(p * 4294967296.0)), 4294967295))
        keep = h >= threshold                               # P(keep) = 1 - p (exact to 2^-32)
        y = jnp.where(keep, y * jnp.float32(1.0 / (1.0 - p)), jnp.float32(0.0))

    o_ref[...] = y.astype(o_ref.dtype)


def positional_encoding_forward(x: jnp.ndarray,
                                pe_table: jnp.ndarray,
                                *,
                                dropout_p: float = 0.1,
                                training: bool = True,
                                seed: int = 0,
                                input_scale: float = 1.0) -> jnp.ndarray:
    """PositionalEncoding.forward (optionally fusing a pre-scale of the input).

    x: (seq_len, batch, d_model);  pe_table: (max_len, 1, d_model).
    """
    S, B, D = x.shape
    dtype = x.dtype
    total = S * B

    # Lane-dense 2-D layout: rows = seq*batch, lanes = d_model.
    x_rows = x.reshape(total, D)
    pe_rows = jnp.broadcast_to(pe_table[:S, 0, :].astype(dtype)[:, None, :],
                               (S, B, D)).reshape(total, D)

    row_tile = _row_tile(total)
    grid = (pl.cdiv(total, row_tile),)
    seed_arr = jnp.asarray([seed], dtype=jnp.int32)

    kernel = functools.partial(_pe_dropout_kernel, p=float(dropout_p),
                               training=bool(training), scale=float(input_scale))

    out = pl.pallas_call(
        kernel,
        out_shape=jax.ShapeDtypeStruct((total, D), dtype),
        grid=grid,
        in_specs=[
            pl.BlockSpec(memory_space=pltpu.SMEM),           # seed scalar
            pl.BlockSpec((row_tile, D), lambda i: (i, 0)),   # x row tile
            pl.BlockSpec((row_tile, D), lambda i: (i, 0)),   # pe row tile
        ],
        out_specs=pl.BlockSpec((row_tile, D), lambda i: (i, 0)),
        compiler_params=_tpu_compiler_params(("parallel",), _VMEM_LIMIT_BYTES),
    )(seed_arr, x_rows, pe_rows)
    return out.reshape(S, B, D)


# ---------------------------------------------------------------------------
# Kernel 2: decoder Linear  y = x @ W + b   (W == torch decoder.weight.T)
# ---------------------------------------------------------------------------
def _linear_kernel(x_ref, w_ref, b_ref, o_ref):
    acc = jnp.dot(x_ref[...], w_ref[...], preferred_element_type=jnp.float32)
    o_ref[...] = (acc + b_ref[...].astype(jnp.float32)).astype(o_ref.dtype)


def decoder_linear(x: jnp.ndarray, w: jnp.ndarray, b: jnp.ndarray) -> jnp.ndarray:
    """x: (S, B, D), w: (D, N), b: (N,)  ->  (S, B, N)."""
    S, B, D = x.shape
    N = w.shape[1]
    total = S * B
    row_tile = total if total <= 512 else 512
    grid = (pl.cdiv(total, row_tile),)

    out = pl.pallas_call(
        _linear_kernel,
        out_shape=jax.ShapeDtypeStruct((total, N), x.dtype),
        grid=grid,
        in_specs=[
            pl.BlockSpec((row_tile, D), lambda i: (i, 0)),
            pl.BlockSpec((D, N), lambda i: (0, 0)),          # weights resident across the grid
            pl.BlockSpec((1, N), lambda i: (0, 0)),
        ],
        out_specs=pl.BlockSpec((row_tile, N), lambda i: (i, 0)),
        compiler_params=_tpu_compiler_params(("parallel",), _VMEM_LIMIT_BYTES),
    )(x.reshape(total, D), w, b.reshape(1, N))
    return out.reshape(S, B, N)


# ---------------------------------------------------------------------------
# LinearTransformer.forward
# ---------------------------------------------------------------------------
def linear_transformer_forward(src, src_mask, params, *, dropout_p=0.5,
                               training=True, seed=0):
    """src: (S, B) int token ids;  returns (S, B, ntoken)."""
    del src_mask  # only consumed by the external transformer_encoder (see TODO below)
    emb = params["embedding"]                # (ntoken, d_model)
    d_model = emb.shape[1]

    # TODO(synk): embedding row-gather stays in XLA (jnp.take); a data-dependent DMA
    # gather kernel is out of scope and not the hot path here.
    h = jnp.take(emb, src, axis=0)           # (S, B, d_model)

    # Fused: h * sqrt(d_model) + positional encoding + dropout (one Pallas kernel).
    h = positional_encoding_forward(h, params["pe"], dropout_p=dropout_p,
                                    training=training, seed=seed,
                                    input_scale=math.sqrt(d_model))

    # TODO(synk): self.transformer_encoder is an externally injected nn.Module with no
    # definition in this file; treated as identity here.

    return decoder_linear(h, params["dec_w"], params["dec_b"])


if __name__ == "__main__":
    key = jax.random.PRNGKey(0)
    seq_len, batch, d_model, n_token, max_len = 8, 2, 32, 256, 64
    k_src, k_emb, k_dec, k_x = jax.random.split(key, 4)

    src = jax.random.randint(k_src, (seq_len, batch), 0, n_token, dtype=jnp.int32)
    src_mask = jnp.zeros((seq_len, seq_len), dtype=jnp.float32)
    params = {
        "embedding": jax.random.uniform(k_emb, (n_token, d_model),
                                        minval=-0.1, maxval=0.1, dtype=jnp.float32),
        "pe": make_pe_table(d_model, max_len),
        "dec_w": jax.random.uniform(k_dec, (d_model, n_token),
                                    minval=-0.1, maxval=0.1, dtype=jnp.float32),
        "dec_b": jnp.zeros((n_token,), dtype=jnp.float32),
    }

    # --- standalone PositionalEncoding check: eval mode must equal x + pe exactly ---
    x = jax.random.normal(k_x, (seq_len, batch, d_model), dtype=jnp.float32)
    y_eval = positional_encoding_forward(x, params["pe"], dropout_p=0.1, training=False)
    jax.block_until_ready(y_eval)
    assert jnp.allclose(y_eval, x + params["pe"][:seq_len], atol=1e-6, rtol=1e-6)

    # --- full forward, eval mode, vs pure-JAX reference ---
    out_eval = linear_transformer_forward(src, src_mask, params,
                                          dropout_p=0.5, training=False)
    jax.block_until_ready(out_eval)
    h_ref = jnp.take(params["embedding"], src, axis=0) * math.sqrt(d_model) + params["pe"][:seq_len]
    ref = jnp.dot(h_ref.reshape(-1, d_model), params["dec_w"],
                  precision=lax.Precision.HIGHEST) + params["dec_b"]
    ref = ref.reshape(seq_len, batch, n_token)
    assert out_eval.shape == (seq_len, batch, n_token)
    assert jnp.allclose(out_eval, ref, atol=1e-4, rtol=1e-4), "eval-mode mismatch"

    # --- training mode: dropout mask generated inside the kernel ---
    out_train = linear_transformer_forward(src, src_mask, params,
                                           dropout_p=0.5, training=True, seed=1234)
    jax.block_until_ready(out_train)
    assert out_train.shape == (seq_len, batch, n_token)
    assert bool(jnp.all(jnp.isfinite(out_train)))
    assert not jnp.allclose(out_train, out_eval)   # dropout actually did something

    print("KERNEL_OK")
</pallas_src>

<mosaic_0001>
module attributes {stable_mosaic.version = 11 : i64} {
  func.func @_pe_dropout_kernel(%arg0: i32, %arg1: memref<1xi32, #tpu.memory_space<smem>>, %arg2: memref<16x32xf32, #tpu.memory_space<vmem>>, %arg3: memref<16x32xf32, #tpu.memory_space<vmem>>, %arg4: memref<16x32xf32, #tpu.memory_space<vmem>>) attributes {dimension_semantics = [#tpu.dimension_semantics<parallel>], iteration_bounds = array<i64: 1>, scalar_prefetch = 0 : i64, scratch_operands = 0 : i64, tpu.core_type = #tpu.core_type<tc>, window_params = [{transform_indices = @transform_0, window_bounds = array<i64: 1>}, {transform_indices = @transform_1, window_bounds = array<i64: 16, 32>}, {transform_indices = @transform_2, window_bounds = array<i64: 16, 32>}, {transform_indices = @transform_3, window_bounds = array<i64: 16, 32>}]} {
    %c0 = arith.constant 0 : index
    %c0_0 = arith.constant 0 : index
    %0 = vector.load %arg2[%c0, %c0_0] : memref<16x32xf32, #tpu.memory_space<vmem>>, vector<16x32xf32>
    %c0_1 = arith.constant 0 : index
    %c0_2 = arith.constant 0 : index
    %1 = vector.load %arg3[%c0_1, %c0_2] : memref<16x32xf32, #tpu.memory_space<vmem>>, vector<16x32xf32>
    %2 = arith.addf %0, %1 : vector<16x32xf32>
    %c0_3 = arith.constant 0 : index
    %c0_4 = arith.constant 0 : index
    %3 = vector.load %arg4[%c0_3, %c0_4] : memref<16x32xf32, #tpu.memory_space<vmem>>, vector<16x32xf32>
    tpu.vector_store %arg4[%c0_3, %c0_4], %2 {strides = array<i32>} : memref<16x32xf32, #tpu.memory_space<vmem>>, vector<16x32xf32>,
    return
  }
  func.func @transform_0(%arg0: i32) -> i32 {
    %c0_i32 = arith.constant 0 : i32
    %c0_i32_0 = arith.constant 0 : i32
    return %c0_i32 : i32
  }
  func.func @transform_1(%arg0: i32) -> (i32, i32) {
    %c0_i32 = arith.constant 0 : i32
    %c0_i32_0 = arith.constant 0 : i32
    return %arg0, %c0_i32 : i32, i32
  }
  func.func @transform_2(%arg0: i32) -> (i32, i32) {
    %c0_i32 = arith.constant 0 : i32
    %c0_i32_0 = arith.constant 0 : i32
    return %arg0, %c0_i32 : i32, i32
  }
  func.func @transform_3(%arg0: i32) -> (i32, i32) {
    %c0_i32 = arith.constant 0 : i32
    %c0_i32_0 = arith.constant 0 : i32
    return %arg0, %c0_i32 : i32, i32
  }
}

</mosaic_0001>

<llo_original>
// kernel: tpu_custom_call.1
$region0: #{tpu_custom_call.1}
  #allocation0 [shape = 'u32[]', space=smem, size = 0x4, offset = 0x4, fixed_abs, tag = 'smem constant byte address 0x4 - core index']
  #allocation1 [shape = 'u32[144,128]{1,0:T(1,128)}', space=vmem, size = 0x12000, scoped, tag = 'internal scratch']
  #allocation2 [shape = 's32[1]{0:T(128)S(6)}', space=smem, size = 0x200, scoped, tag = 'scoped memory for tpu_custom_call.1']
  %s0 = inlined_call_operand.<no memory space> [shape: s32[1], index: 0, kind: input, shape index: {}]
  %s1 = inlined_call_operand.hbm [shape: f32[16,32], index: 1, kind: input, shape index: {}]
  %s2 = inlined_call_operand.hbm [shape: f32[16,32], index: 2, kind: input, shape index: {}]
  %s3 = inlined_call_operand.hbm [shape: f32[16,32], index: 3, kind: output, shape index: {}]
  %s4 = sld [smem:[#allocation0]]
  $region30: #{tpu_custom_call.1} parent=0
    _
  %s6 = ssub.s32 1, %s4
  %s7 = scalar_select 0, %s6, %s4
  %8 = sst [smem:[#allocation2]] %s0
  $region1: #{tpu_custom_call.1} parent=0
    #allocation3 [shape = 'u8[8192]{0}', space=vmem, size = 0x2000, scoped, tag = 'input window, operand 1, single buffered']
    #allocation4 [shape = 's32[1]{0}', space=sflag, size = 0x4, scoped, tag = 'scoped memory for tpu_custom_call.1']
    #allocation5 [shape = 's32[1]{0}', space=sflag, size = 0x4, scoped, tag = 'scoped memory for tpu_custom_call.1']
    #allocation6 [shape = 'u8[8192]{0}', space=vmem, size = 0x2000, scoped, tag = 'input window, operand 2, single buffered']
    #allocation7 [shape = 's32[1]{0}', space=sflag, size = 0x4, scoped, tag = 'scoped memory for tpu_custom_call.1']
    #allocation8 [shape = 'u8[8192]{0}', space=vmem, size = 0x2000, scoped, tag = 'output window, operand 0, single buffered']
    %9 = vsyncpa [#allocation4], 0
    %10 = vsyncpa [#allocation7], 0
    %11 = vsyncpa [#allocation5], 0
    // Predicated region
    $region2: #{tpu_custom_call.1} parent=1 // pred_check
      _
    $region3: #{tpu_custom_call.1} parent=1 // pred_check_branch
      %13 = sbr.rel (0) target = $region5
    $region4: #{tpu_custom_call.1} parent=1 // pred_region
      _
    $region5: #{tpu_custom_call.1} parent=1 // pred_fallthru
      _
    // Predicated region
    $region6: #{tpu_custom_call.1} parent=1 // pred_check
      _
    $region7: #{tpu_custom_call.1} parent=1 // pred_check_branch
      %15 = sbr.rel (0) target = $region9
    $region8: #{tpu_custom_call.1} parent=1 // pred_region
      %s17 = ssub.s32 256, 256
      %18 = vsyncadd [#allocation4], %s17
      %s19 = sshll.u32 [#allocation3], 4
      %s20 = int_to_ptr.vmem [resolvable:$true] %s19
      %25 = dma.hbm_to_vmem [thread:$0]  %s1, 256, %s20, [#allocation4], 128, 128, 8
    $region9: #{tpu_custom_call.1} parent=1 // pred_fallthru
      _
    // Predicated region
    $region10: #{tpu_custom_call.1} parent=1 // pred_check
      _
    $region11: #{tpu_custom_call.1} parent=1 // pred_check_branch
      %27 = sbr.rel (0) target = $region13
    $region12: #{tpu_custom_call.1} parent=1 // pred_region
      %s29 = ssub.s32 256, 256
      %30 = vsyncadd [#allocation7], %s29
      %s31 = sshll.u32 [#allocation6], 4
      %s32 = int_to_ptr.vmem [resolvable:$true] %s31
      %37 = dma.hbm_to_vmem [thread:$0]  %s2, 256, %s32, [#allocation7], 128, 128, 8
    $region13: #{tpu_custom_call.1} parent=1 // pred_fallthru
      _
    // Predicated region
    $region14: #{tpu_custom_call.1} parent=1 // pred_check
      _
    $region15: #{tpu_custom_call.1} parent=1 // pred_check_branch
      %39 = sbr.rel (0) target = $region17
    $region16: #{tpu_custom_call.1} parent=1 // pred_region
      %40 = dma.done [#allocation4], 256
    $region17: #{tpu_custom_call.1} parent=1 // pred_fallthru
      _
    // Predicated region
    $region18: #{tpu_custom_call.1} parent=1 // pred_check
      _
    $region19: #{tpu_custom_call.1} parent=1 // pred_check_branch
      %42 = sbr.rel (0) target = $region21
    $region20: #{tpu_custom_call.1} parent=1 // pred_region
      %43 = dma.done [#allocation7], 256
    $region21: #{tpu_custom_call.1} parent=1 // pred_fallthru
      _
    %v44 = vld [vmem:[#allocation3] sm:$0xff]
    %v45 = vld [vmem:[#allocation3 + $0x8] sm:$0xff]
    %v46 = vld [vmem:[#allocation6] sm:$0xff]
    %v47 = vld [vmem:[#allocation6 + $0x8] sm:$0xff]
    %v48 = vadd.f32 %v44, %v46
    %v49 = vadd.f32 %v45, %v47
    %vm50 = vcmask 261120
    %51 = vst.msk [vmem:[#allocation8] sm:$0xff] %vm50, %v48
    %52 = vst.msk [vmem:[#allocation8 + $0x8] sm:$0xff] %vm50, %v49
    // Predicated region
    $region22: #{tpu_custom_call.1} parent=1 // pred_check
      _
    $region23: #{tpu_custom_call.1} parent=1 // pred_check_branch
      %54 = sbr.rel (0) target = $region25
    $region24: #{tpu_custom_call.1} parent=1 // pred_region
      %s56 = ssub.s32 256, 256
      %57 = vsyncadd [#allocation5], %s56
      %s58 = sshll.u32 [#allocation8], 4
      %s59 = int_to_ptr.vmem [resolvable:$true] %s58
      %64 = dma.vmem_to_hbm [thread:$0]  %s59, 256, %s3, [#allocation5], 128, 128, 8
    $region25: #{tpu_custom_call.1} parent=1 // pred_fallthru
      _
    // Predicated region
    $region26: #{tpu_custom_call.1} parent=1 // pred_check
      _
    $region27: #{tpu_custom_call.1} parent=1 // pred_check_branch
      %66 = sbr.rel (0) target = $region29
    $region28: #{tpu_custom_call.1} parent=1 // pred_region
      %67 = dma.done [#allocation5], 256
    $region29: #{tpu_custom_call.1} parent=1 // pred_fallthru
      _
    %68 = vsyncpa [#allocation4], 1
    %69 = vsyncpa [#allocation7], 1
    %70 = vsyncpa [#allocation5], 1

</llo_original>
